<compile_context>
chip_gen: v6e
topology: v6e:2x2x1
jax: 0.10.0
libtpu: 0.0.40
codegen_flags: <defaults>
</compile_context>

<pallas_src>
import functools

import jax
import jax.numpy as jnp
from jax.experimental import pallas as pl
from jax.experimental.pallas import tpu as pltpu

HIDDEN = 64
LANES = 128


def _round_up(x, m):
    return (x + m - 1) // m * m


def cost_critic_kernel(x_ref, w1_ref, b1_ref, w2_ref, b2_ref, w3_ref, b3_ref, o_ref):
    # x:  (TILE_B, D_PAD) bf16      w1: (D_PAD, H_PAD) bf16   w2: (H_PAD, H_PAD) bf16
    # b1/b2: (1, H_PAD) f32         w3: (1, H_PAD) f32        b3: (1, LANES) f32
    # o:  (TILE_B, LANES) f32

    # fc1 + relu (MXU in bf16, f32 accumulate, f32 elementwise)
    h1 = jnp.dot(x_ref[...], w1_ref[...], preferred_element_type=jnp.float32)
    h1 = jnp.maximum(h1 + b1_ref[...], 0.0)

    # fc2 + relu
    h2 = jnp.dot(h1.astype(w2_ref.dtype), w2_ref[...],
                 preferred_element_type=jnp.float32)
    h2 = jnp.maximum(h2 + b2_ref[...], 0.0)

    # Value head: VPU broadcast-multiply + XLU cross-lane reduce (cheaper than
    # an N=1 MXU matmul).  Padded columns of w3 / h2 are zero -> contribute 0.
    v = jnp.sum(h2 * w3_ref[...], axis=-1, keepdims=True)            # (TILE_B, 1)

    # Lane-dense store: replicate value across 128 lanes; wrapper keeps col 0.
    o_ref[...] = (jnp.broadcast_to(v, o_ref.shape) + b3_ref[...]).astype(o_ref.dtype)


def init_params(state_dim, key):
    """nn.Linear-style init; weights stored transposed as (in, out), all f32."""
    ks = jax.random.split(key, 6)

    def linear(kw, kb, fan_in, fan_out):
        bound = 1.0 / (fan_in ** 0.5)
        w = jax.random.uniform(kw, (fan_in, fan_out), jnp.float32, -bound, bound)
        b = jax.random.uniform(kb, (1, fan_out), jnp.float32, -bound, bound)
        return w, b

    w1, b1 = linear(ks[0], ks[1], state_dim, HIDDEN)
    w2, b2 = linear(ks[2], ks[3], HIDDEN, HIDDEN)
    w3, b3 = linear(ks[4], ks[5], HIDDEN, 1)
    return {"w1": w1, "b1": b1, "w2": w2, "b2": b2, "w3": w3, "b3": b3}


def prepare_params(params, state_dim):
    """One-time host-side zero-padding of feature dims to multiples of 128 and
    bf16 cast of the MXU weight operands (biases / value-head row stay f32)."""
    d_pad = _round_up(state_dim, LANES)
    h_pad = _round_up(HIDDEN, LANES)

    w1 = jnp.zeros((d_pad, h_pad), jnp.bfloat16).at[:state_dim, :HIDDEN].set(
        params["w1"].astype(jnp.bfloat16))
    w2 = jnp.zeros((h_pad, h_pad), jnp.bfloat16).at[:HIDDEN, :HIDDEN].set(
        params["w2"].astype(jnp.bfloat16))
    b1 = jnp.zeros((1, h_pad), jnp.float32).at[:, :HIDDEN].set(params["b1"])
    b2 = jnp.zeros((1, h_pad), jnp.float32).at[:, :HIDDEN].set(params["b2"])
    w3 = jnp.zeros((1, h_pad), jnp.float32).at[:, :HIDDEN].set(
        params["w3"].reshape(1, HIDDEN))
    b3 = jnp.broadcast_to(params["b3"].reshape(1, 1), (1, LANES)).astype(jnp.float32)
    return {"w1": w1, "b1": b1, "w2": w2, "b2": b2, "w3": w3, "b3": b3}


@functools.partial(jax.jit, static_argnames=("tile_b",))
def cost_critic_forward(state, prepared, tile_b=None):
    """state: (B, state_dim) f32; prepared: output of prepare_params. -> (B, 1) f32."""
    B, d = state.shape
    d_pad = prepared["w1"].shape[0]

    if tile_b is None:
        # Large enough to amortize per-step overhead (~0.35 us/step), small
        # enough to stay well inside v7x's 64 MiB VMEM with double-buffering;
        # multiple of 16 so bf16 sublane packing is satisfied.
        tile_b = min(512, _round_up(B, 16))
    b_pad = _round_up(B, tile_b)

    # Pad batch + features with zeros and cast the MXU input stream to bf16.
    x = jnp.zeros((b_pad, d_pad), jnp.bfloat16).at[:B, :d].set(
        state.astype(jnp.bfloat16))

    grid = (b_pad // tile_b,)

    def resident(a):  # weights/biases: same block every step -> stay in VMEM
        return pl.BlockSpec(a.shape, lambda i: (0, 0))

    out = pl.pallas_call(
        cost_critic_kernel,
        out_shape=jax.ShapeDtypeStruct((b_pad, LANES), jnp.float32),
        grid=grid,
        in_specs=[
            pl.BlockSpec((tile_b, d_pad), lambda i: (i, 0)),  # streamed state tiles
            resident(prepared["w1"]),
            resident(prepared["b1"]),
            resident(prepared["w2"]),
            resident(prepared["b2"]),
            resident(prepared["w3"]),
            resident(prepared["b3"]),
        ],
        out_specs=pl.BlockSpec((tile_b, LANES), lambda i: (i, 0)),
        compiler_params=pltpu.CompilerParams(
            dimension_semantics=("parallel",),
            vmem_limit_bytes=32 * 1024 * 1024,
        ),
    )(x, prepared["w1"], prepared["b1"], prepared["w2"], prepared["b2"],
      prepared["w3"], prepared["b3"])

    return out[:B, :1]


def reference_forward(state, p):
    """Faithful f32 reference matching the PyTorch module."""
    h1 = jnp.maximum(state @ p["w1"] + p["b1"], 0.0)
    h2 = jnp.maximum(h1 @ p["w2"] + p["b2"], 0.0)
    return h2 @ p["w3"] + p["b3"]


if __name__ == "__main__":
    key = jax.random.PRNGKey(0)
    k_params, k_state = jax.random.split(key)

    batch, state_dim = 8, 32
    params = init_params(state_dim, k_params)
    prepared = prepare_params(params, state_dim)
    state = jax.random.normal(k_state, (batch, state_dim), jnp.float32)

    out = cost_critic_forward(state, prepared)
    out = jax.block_until_ready(out)

    ref = reference_forward(state, params)
    assert out.shape == (batch, 1), out.shape
    # MXU operands are bf16 (f32 accumulation), so compare against the pure-f32
    # reference with a bf16-level tolerance.
    max_err = float(jnp.max(jnp.abs(out - ref)))
    assert jnp.allclose(out, ref, atol=5e-2, rtol=5e-2), f"mismatch vs reference: {max_err}"

    print("KERNEL_OK")
</pallas_src>

<mosaic_0001>
module attributes {stable_mosaic.version = 11 : i64} {
  func.func @cost_critic_kernel(%arg0: i32, %arg1: memref<16x128xbf16, #tpu.memory_space<vmem>>, %arg2: memref<128x128xbf16, #tpu.memory_space<vmem>>, %arg3: memref<1x128xf32, #tpu.memory_space<vmem>>, %arg4: memref<128x128xbf16, #tpu.memory_space<vmem>>, %arg5: memref<1x128xf32, #tpu.memory_space<vmem>>, %arg6: memref<1x128xf32, #tpu.memory_space<vmem>>, %arg7: memref<1x128xf32, #tpu.memory_space<vmem>>, %arg8: memref<16x128xf32, #tpu.memory_space<vmem>>) attributes {dimension_semantics = [#tpu.dimension_semantics<parallel>], iteration_bounds = array<i64: 1>, scalar_prefetch = 0 : i64, scratch_operands = 0 : i64, tpu.core_type = #tpu.core_type<tc>, window_params = [{transform_indices = @transform_0, window_bounds = array<i64: 16, 128>}, {pipeline_mode = #tpu.pipeline_mode<synchronous>, transform_indices = @transform_1, window_bounds = array<i64: 128, 128>}, {pipeline_mode = #tpu.pipeline_mode<synchronous>, transform_indices = @transform_2, window_bounds = array<i64: 1, 128>}, {pipeline_mode = #tpu.pipeline_mode<synchronous>, transform_indices = @transform_3, window_bounds = array<i64: 128, 128>}, {pipeline_mode = #tpu.pipeline_mode<synchronous>, transform_indices = @transform_4, window_bounds = array<i64: 1, 128>}, {pipeline_mode = #tpu.pipeline_mode<synchronous>, transform_indices = @transform_5, window_bounds = array<i64: 1, 128>}, {pipeline_mode = #tpu.pipeline_mode<synchronous>, transform_indices = @transform_6, window_bounds = array<i64: 1, 128>}, {transform_indices = @transform_7, window_bounds = array<i64: 16, 128>}]} {
    %c0 = arith.constant 0 : index
    %c0_0 = arith.constant 0 : index
    %0 = vector.load %arg1[%c0, %c0_0] : memref<16x128xbf16, #tpu.memory_space<vmem>>, vector<16x128xbf16>
    %c0_1 = arith.constant 0 : index
    %c0_2 = arith.constant 0 : index
    %1 = vector.load %arg2[%c0_1, %c0_2] : memref<128x128xbf16, #tpu.memory_space<vmem>>, vector<128x128xbf16>
    %cst = arith.constant dense<0.000000e+00> : vector<16x128xf32>
    %2 = tpu.matmul %0, %1, %cst {dimension_numbers = #tpu.dot_dimension_numbers<[1], [0], [0], [1], [0, 0, 1, 1], [], []>} : vector<16x128xbf16>, vector<128x128xbf16>, vector<16x128xf32> -> vector<16x128xf32>
    %c0_3 = arith.constant 0 : index
    %c0_4 = arith.constant 0 : index
    %3 = vector.load %arg3[%c0_3, %c0_4] : memref<1x128xf32, #tpu.memory_space<vmem>>, vector<1x128xf32>
    %4 = vector.broadcast %3 : vector<1x128xf32> to vector<16x128xf32>
    %5 = arith.addf %2, %4 : vector<16x128xf32>
    %cst_5 = arith.constant 0.000000e+00 : f32
    %6 = vector.broadcast %cst_5 : f32 to vector<16x128xf32>
    %7 = arith.maximumf %5, %6 : vector<16x128xf32>
    %8 = arith.truncf %7 : vector<16x128xf32> to vector<16x128xbf16>
    %c0_6 = arith.constant 0 : index
    %c0_7 = arith.constant 0 : index
    %9 = vector.load %arg4[%c0_6, %c0_7] : memref<128x128xbf16, #tpu.memory_space<vmem>>, vector<128x128xbf16>
    %cst_8 = arith.constant dense<0.000000e+00> : vector<16x128xf32>
    %10 = tpu.matmul %8, %9, %cst_8 {dimension_numbers = #tpu.dot_dimension_numbers<[1], [0], [0], [1], [0, 0, 1, 1], [], []>} : vector<16x128xbf16>, vector<128x128xbf16>, vector<16x128xf32> -> vector<16x128xf32>
    %c0_9 = arith.constant 0 : index
    %c0_10 = arith.constant 0 : index
    %11 = vector.load %arg5[%c0_9, %c0_10] : memref<1x128xf32, #tpu.memory_space<vmem>>, vector<1x128xf32>
    %12 = vector.broadcast %11 : vector<1x128xf32> to vector<16x128xf32>
    %13 = arith.addf %10, %12 : vector<16x128xf32>
    %cst_11 = arith.constant 0.000000e+00 : f32
    %14 = vector.broadcast %cst_11 : f32 to vector<16x128xf32>
    %15 = arith.maximumf %13, %14 : vector<16x128xf32>
    %c0_12 = arith.constant 0 : index
    %c0_13 = arith.constant 0 : index
    %16 = vector.load %arg6[%c0_12, %c0_13] : memref<1x128xf32, #tpu.memory_space<vmem>>, vector<1x128xf32>
    %17 = vector.broadcast %16 : vector<1x128xf32> to vector<16x128xf32>
    %18 = arith.mulf %15, %17 : vector<16x128xf32>
    %cst_14 = arith.constant dense<0.000000e+00> : vector<16xf32>
    %19 = vector.multi_reduction <add>, %18, %cst_14 [1] : vector<16x128xf32> to vector<16xf32>
    %20 = vector.shape_cast %19 : vector<16xf32> to vector<16x1xf32>
    %21 = vector.shape_cast %20 : vector<16x1xf32> to vector<16x1xf32>
    %22 = vector.broadcast %21 : vector<16x1xf32> to vector<16x128xf32>
    %c0_15 = arith.constant 0 : index
    %c0_16 = arith.constant 0 : index
    %23 = vector.load %arg7[%c0_15, %c0_16] : memref<1x128xf32, #tpu.memory_space<vmem>>, vector<1x128xf32>
    %24 = vector.broadcast %23 : vector<1x128xf32> to vector<16x128xf32>
    %25 = arith.addf %22, %24 : vector<16x128xf32>
    %c0_17 = arith.constant 0 : index
    %c0_18 = arith.constant 0 : index
    %26 = vector.load %arg8[%c0_17, %c0_18] : memref<16x128xf32, #tpu.memory_space<vmem>>, vector<16x128xf32>
    tpu.vector_store %arg8[%c0_17, %c0_18], %25 {strides = array<i32>} : memref<16x128xf32, #tpu.memory_space<vmem>>, vector<16x128xf32>,
    return
  }
  func.func @transform_0(%arg0: i32) -> (i32, i32) {
    %c0_i32 = arith.constant 0 : i32
    %c0_i32_0 = arith.constant 0 : i32
    return %arg0, %c0_i32 : i32, i32
  }
  func.func @transform_1(%arg0: i32) -> (i32, i32) {
    %c0_i32 = arith.constant 0 : i32
    %c0_i32_0 = arith.constant 0 : i32
    %c0_i32_1 = arith.constant 0 : i32
    return %c0_i32, %c0_i32_0 : i32, i32
  }
  func.func @transform_2(%arg0: i32) -> (i32, i32) {
    %c0_i32 = arith.constant 0 : i32
    %c0_i32_0 = arith.constant 0 : i32
    %c0_i32_1 = arith.constant 0 : i32
    return %c0_i32, %c0_i32_0 : i32, i32
  }
  func.func @transform_3(%arg0: i32) -> (i32, i32) {
    %c0_i32 = arith.constant 0 : i32
    %c0_i32_0 = arith.constant 0 : i32
    %c0_i32_1 = arith.constant 0 : i32
    return %c0_i32, %c0_i32_0 : i32, i32
  }
  func.func @transform_4(%arg0: i32) -> (i32, i32) {
    %c0_i32 = arith.constant 0 : i32
    %c0_i32_0 = arith.constant 0 : i32
    %c0_i32_1 = arith.constant 0 : i32
    return %c0_i32, %c0_i32_0 : i32, i32
  }
  func.func @transform_5(%arg0: i32) -> (i32, i32) {
    %c0_i32 = arith.constant 0 : i32
    %c0_i32_0 = arith.constant 0 : i32
    %c0_i32_1 = arith.constant 0 : i32
    return %c0_i32, %c0_i32_0 : i32, i32
  }
  func.func @transform_6(%arg0: i32) -> (i32, i32) {
    %c0_i32 = arith.constant 0 : i32
    %c0_i32_0 = arith.constant 0 : i32
    %c0_i32_1 = arith.constant 0 : i32
    return %c0_i32, %c0_i32_0 : i32, i32
  }
  func.func @transform_7(%arg0: i32) -> (i32, i32) {
    %c0_i32 = arith.constant 0 : i32
    %c0_i32_0 = arith.constant 0 : i32
    return %arg0, %c0_i32 : i32, i32
  }
}

</mosaic_0001>

<llo_original>
// kernel: cost_critic_forward.1
$region0: #{cost_critic_forward.1}
  #allocation0 [shape = 'u32[]', space=smem, size = 0x4, offset = 0x4, fixed_abs, tag = 'smem constant byte address 0x4 - core index']
  #allocation1 [shape = 'u32[144,128]{1,0:T(1,128)}', space=vmem, size = 0x12000, scoped, tag = 'internal scratch']
  %s0 = inlined_call_operand.vmem [shape: bf16[16,128], index: 0, kind: input, shape index: {}]
  %s1 = inlined_call_operand.hbm [shape: bf16[128,128], index: 1, kind: input, shape index: {}]
  %s2 = inlined_call_operand.vmem [shape: f32[1,128], index: 2, kind: input, shape index: {}]
  %s3 = inlined_call_operand.hbm [shape: bf16[128,128], index: 3, kind: input, shape index: {}]
  %s4 = inlined_call_operand.vmem [shape: f32[1,128], index: 4, kind: input, shape index: {}]
  %s5 = inlined_call_operand.vmem [shape: f32[1,128], index: 5, kind: input, shape index: {}]
  %s6 = inlined_call_operand.vmem [shape: f32[1,128], index: 6, kind: input, shape index: {}]
  %s7 = inlined_call_operand.vmem [shape: f32[16,128], index: 7, kind: output, shape index: {}]
  %s8 = sld [smem:[#allocation0]]
  $region46: #{cost_critic_forward.1} parent=0
    _
  %s10 = ssub.s32 1, %s8
  %s11 = scalar_select 0, %s10, %s8
  $region1: #{cost_critic_forward.1} parent=0
    #allocation2 [shape = 'u8[32768]{0}', space=vmem, size = 0x8000, scoped, tag = 'input window, operand 1, single buffered']
    #allocation3 [shape = 's32[1]{0}', space=sflag, size = 0x4, scoped, tag = 'scoped memory for cost_critic_forward.1']
    #allocation4 [shape = 'u8[32768]{0}', space=vmem, size = 0x8000, scoped, tag = 'input window, operand 3, single buffered']
    #allocation5 [shape = 's32[1]{0}', space=sflag, size = 0x4, scoped, tag = 'scoped memory for cost_critic_forward.1']
    %12 = vsyncpa [#allocation3], 0
    %13 = vsyncpa [#allocation5], 0
    // Predicated region
    $region2: #{cost_critic_forward.1} parent=1 // pred_check
      _
    $region3: #{cost_critic_forward.1} parent=1 // pred_check_branch
      %15 = sbr.rel (0) target = $region5
    $region4: #{cost_critic_forward.1} parent=1 // pred_region
      _
    $region5: #{cost_critic_forward.1} parent=1 // pred_fallthru
      _
    // Predicated region
    $region6: #{cost_critic_forward.1} parent=1 // pred_check
      _
    $region7: #{cost_critic_forward.1} parent=1 // pred_check_branch
      %17 = sbr.rel (0) target = $region9
    $region8: #{cost_critic_forward.1} parent=1 // pred_region
      %s19 = ssub.s32 1024, 1024
      %20 = vsyncadd [#allocation3], %s19
      %s21 = sshll.u32 [#allocation2], 4
      %s22 = int_to_ptr.vmem [resolvable:$true] %s21
      %27 = dma.hbm_to_vmem [thread:$0]  %s1, 1024, %s22, [#allocation3], 64, 64, 4
    $region9: #{cost_critic_forward.1} parent=1 // pred_fallthru
      _
    // Predicated region
    $region10: #{cost_critic_forward.1} parent=1 // pred_check
      _
    $region11: #{cost_critic_forward.1} parent=1 // pred_check_branch
      %29 = sbr.rel (0) target = $region13
    $region12: #{cost_critic_forward.1} parent=1 // pred_region
      _
    $region13: #{cost_critic_forward.1} parent=1 // pred_fallthru
      _
    // Predicated region
    $region14: #{cost_critic_forward.1} parent=1 // pred_check
      _
    $region15: #{cost_critic_forward.1} parent=1 // pred_check_branch
      %31 = sbr.rel (0) target = $region17
    $region16: #{cost_critic_forward.1} parent=1 // pred_region
      %s33 = ssub.s32 1024, 1024
      %34 = vsyncadd [#allocation5], %s33
      %s35 = sshll.u32 [#allocation4], 4
      %s36 = int_to_ptr.vmem [resolvable:$true] %s35
      %41 = dma.hbm_to_vmem [thread:$0]  %s3, 1024, %s36, [#allocation5], 64, 64, 4
    $region17: #{cost_critic_forward.1} parent=1 // pred_fallthru
      _
    // Predicated region
    $region18: #{cost_critic_forward.1} parent=1 // pred_check
      _
    $region19: #{cost_critic_forward.1} parent=1 // pred_check_branch
      %43 = sbr.rel (0) target = $region21
    $region20: #{cost_critic_forward.1} parent=1 // pred_region
      _
    $region21: #{cost_critic_forward.1} parent=1 // pred_fallthru
      _
    // Predicated region
    $region22: #{cost_critic_forward.1} parent=1 // pred_check
      _
    $region23: #{cost_critic_forward.1} parent=1 // pred_check_branch
      %45 = sbr.rel (0) target = $region25
    $region24: #{cost_critic_forward.1} parent=1 // pred_region
      _
    $region25: #{cost_critic_forward.1} parent=1 // pred_fallthru
      _
    // Predicated region
    $region26: #{cost_critic_forward.1} parent=1 // pred_check
      _
    $region27: #{cost_critic_forward.1} parent=1 // pred_check_branch
      %47 = sbr.rel (0) target = $region29
    $region28: #{cost_critic_forward.1} parent=1 // pred_region
      _
    $region29: #{cost_critic_forward.1} parent=1 // pred_fallthru
      _
    // Predicated region
    $region30: #{cost_critic_forward.1} parent=1 // pred_check
      _
    $region31: #{cost_critic_forward.1} parent=1 // pred_check_branch
      %49 = sbr.rel (0) target = $region33
    $region32: #{cost_critic_forward.1} parent=1 // pred_region
      %50 = dma.done [#allocation3], 1024
    $region33: #{cost_critic_forward.1} parent=1 // pred_fallthru
      _
    // Predicated region
    $region34: #{cost_critic_forward.1} parent=1 // pred_check
      _
    $region35: #{cost_critic_forward.1} parent=1 // pred_check_branch
      %52 = sbr.rel (0) target = $region37
    $region36: #{cost_critic_forward.1} parent=1 // pred_region
      %53 = dma.done [#allocation5], 1024
    $region37: #{cost_critic_forward.1} parent=1 // pred_fallthru
      _
    %v55 = vld [vmem:[%s0] sm:$0xf]
    %v56 = vld [vmem:[%s0 + $0x4] sm:$0xf]
    %v57 = vld [vmem:[#allocation2] sm:$0xf]
    %v58 = vld [vmem:[#allocation2 + $0x4] sm:$0xf]
    %v59 = vld [vmem:[#allocation2 + $0x8] sm:$0xf]
    %v60 = vld [vmem:[#allocation2 + $0xc] sm:$0xf]
    %v61 = vld [vmem:[#allocation2 + $0x10] sm:$0xf]
    %v62 = vld [vmem:[#allocation2 + $0x14] sm:$0xf]
    %v63 = vld [vmem:[#allocation2 + $0x18] sm:$0xf]
    %v64 = vld [vmem:[#allocation2 + $0x1c] sm:$0xf]
    %v65 = vld [vmem:[#allocation2 + $0x20] sm:$0xf]
    %v66 = vld [vmem:[#allocation2 + $0x24] sm:$0xf]
    %v67 = vld [vmem:[#allocation2 + $0x28] sm:$0xf]
    %v68 = vld [vmem:[#allocation2 + $0x2c] sm:$0xf]
    %v69 = vld [vmem:[#allocation2 + $0x30] sm:$0xf]
    %v70 = vld [vmem:[#allocation2 + $0x34] sm:$0xf]
    %v71 = vld [vmem:[#allocation2 + $0x38] sm:$0xf]
    %v72 = vld [vmem:[#allocation2 + $0x3c] sm:$0xf]
    %v73 = vld [vmem:[%s2] sm:$0x1]
    %v75 = vlaneseq
    %v76 = vshrl.u32 %v75, 7
    %v77 = vsub.s32 0, %v76
    %v78 = vrot.slane %v73, %v77
    %v82 = vunpack.c.l.b16 %v55
    %v83 = vunpack.c.l.b16 %v56
    %v84 = vpack.c.b16 %v83, %v82
    %v102 = vunpack.c.l.b16 %v57
    %v103 = vunpack.c.l.b16 %v58
    %v104 = vunpack.c.l.b16 %v59
    %v105 = vunpack.c.l.b16 %v60
    %v106 = vunpack.c.l.b16 %v61
    %v107 = vunpack.c.l.b16 %v62
    %v108 = vunpack.c.l.b16 %v63
    %v109 = vunpack.c.l.b16 %v64
    %v110 = vunpack.c.l.b16 %v65
    %v111 = vunpack.c.l.b16 %v66
    %v112 = vunpack.c.l.b16 %v67
    %v113 = vunpack.c.l.b16 %v68
    %v114 = vunpack.c.l.b16 %v69
    %v115 = vunpack.c.l.b16 %v70
    %v116 = vunpack.c.l.b16 %v71
    %v117 = vunpack.c.l.b16 %v72
    %v118 = vpack.c.b16 %v103, %v102
    %v119 = vpack.c.b16 %v105, %v104
    %v120 = vpack.c.b16 %v107, %v106
    %v121 = vpack.c.b16 %v109, %v108
    %v122 = vpack.c.b16 %v111, %v110
    %v123 = vpack.c.b16 %v113, %v112
    %v124 = vpack.c.b16 %v115, %v114
    %v125 = vpack.c.b16 %v117, %v116
    %134 = vmatprep.subr.bf16.mxu0 0
    %135 = vmatpush1.bf16.msra.mxu0 %v125
    %136 = vmatprep.subr.bf16.mxu0 0
    %137 = vmatpush1.bf16.msra.mxu0 %v124
    %138 = vmatprep.subr.bf16.mxu0 0
    %139 = vmatpush1.bf16.msra.mxu0 %v123
    %140 = vmatprep.subr.bf16.mxu0 0
    %141 = vmatpush1.bf16.msra.mxu0 %v122
    %142 = vmatprep.subr.bf16.mxu0 0
    %143 = vmatpush1.bf16.msra.mxu0 %v121
    %144 = vmatprep.subr.bf16.mxu0 0
    %145 = vmatpush1.bf16.msra.mxu0 %v120
    %146 = vmatprep.subr.bf16.mxu0 0
    %147 = vmatpush1.bf16.msra.mxu0 %v119
    %148 = vmatprep.subr.bf16.mxu0 0
    %149 = vmatpush1.bf16.msra.mxu0 %v118
    %150 = vmatprep.subr.bf16.mxu0 0
    %151 = vmatpush2.bf16.msra.mxu0 0
    %152 = vmatprep.subr.bf16.mxu0 0
    %153 = vmatpush2.bf16.msra.mxu0 0
    %154 = vmatprep.subr.bf16.mxu0 0
    %155 = vmatpush2.bf16.msra.mxu0 0
    %156 = vmatprep.subr.bf16.mxu0 0
    %157 = vmatpush2.bf16.msra.mxu0 0
    %158 = vmatprep.subr.bf16.mxu0 0
    %159 = vmatpush2.bf16.msra.mxu0 0
    %160 = vmatprep.subr.bf16.mxu0 0
    %161 = vmatpush2.bf16.msra.mxu0 0
    %162 = vmatprep.subr.bf16.mxu0 0
    %163 = vmatpush2.bf16.msra.mxu0 0
    %164 = vmatprep.subr.bf16.mxu0 0
    %165 = vmatpush2.bf16.msra.mxu0 0
    %166 = vmatprep.mubr.bf16.mxu0 0
    %167 = vmatmul.mubr.bf16.gmra.mxu0 %v84
    %v168 = vpop.f32.mrf.mxu0
    %v169 = vadd.f32 %v78, %v168
    %v170 = vpop.f32.mrf.mxu0
    %v171 = vpop.f32.mrf.mxu0
    %v172 = vadd.f32 %v78, %v171
    %v173 = vpop.f32.mrf.mxu0
    %174 = vdwg.mxu0
    %v175 = vmax.f32 %v169, 0.0
    %v176 = vmax.f32 %v172, 0.0
    %v177 = vpack.c.bf16 %v176, %v175
    %v178 = vld [vmem:[#allocation4] sm:$0xf]
    %v179 = vld [vmem:[#allocation4 + $0x4] sm:$0xf]
    %v180 = vld [vmem:[#allocation4 + $0x8] sm:$0xf]
    %v181 = vld [vmem:[#allocation4 + $0xc] sm:$0xf]
    %v182 = vld [vmem:[#allocation4 + $0x10] sm:$0xf]
    %v183 = vld [vmem:[#allocation4 + $0x14] sm:$0xf]
    %v184 = vld [vmem:[#allocation4 + $0x18] sm:$0xf]
    %v185 = vld [vmem:[#allocation4 + $0x1c] sm:$0xf]
    %v186 = vld [vmem:[#allocation4 + $0x20] sm:$0xf]
    %v187 = vld [vmem:[#allocation4 + $0x24] sm:$0xf]
    %v188 = vld [vmem:[#allocation4 + $0x28] sm:$0xf]
    %v189 = vld [vmem:[#allocation4 + $0x2c] sm:$0xf]
    %v190 = vld [vmem:[#allocation4 + $0x30] sm:$0xf]
    %v191 = vld [vmem:[#allocation4 + $0x34] sm:$0xf]
    %v192 = vld [vmem:[#allocation4 + $0x38] sm:$0xf]
    %v193 = vld [vmem:[#allocation4 + $0x3c] sm:$0xf]
    %v194 = vld [vmem:[%s4] sm:$0x1]
    %v196 = vlaneseq
    %v197 = vshrl.u32 %v196, 7
    %v198 = vsub.s32 0, %v197
    %v199 = vrot.slane %v194, %v198
    %v217 = vunpack.c.l.b16 %v178
    %v218 = vunpack.c.l.b16 %v179
    %v219 = vunpack.c.l.b16 %v180
    %v220 = vunpack.c.l.b16 %v181
    %v221 = vunpack.c.l.b16 %v182
    %v222 = vunpack.c.l.b16 %v183
    %v223 = vunpack.c.l.b16 %v184
    %v224 = vunpack.c.l.b16 %v185
    %v225 = vunpack.c.l.b16 %v186
    %v226 = vunpack.c.l.b16 %v187
    %v227 = vunpack.c.l.b16 %v188
    %v228 = vunpack.c.l.b16 %v189
    %v229 = vunpack.c.l.b16 %v190
    %v230 = vunpack.c.l.b16 %v191
    %v231 = vunpack.c.l.b16 %v192
    %v232 = vunpack.c.l.b16 %v193
    %v233 = vpack.c.b16 %v218, %v217
    %v234 = vpack.c.b16 %v220, %v219
    %v235 = vpack.c.b16 %v222, %v221
    %v236 = vpack.c.b16 %v224, %v223
    %v237 = vpack.c.b16 %v226, %v225
    %v238 = vpack.c.b16 %v228, %v227
    %v239 = vpack.c.b16 %v230, %v229
    %v240 = vpack.c.b16 %v232, %v231
    %249 = vmatprep.subr.bf16.mxu0 0
    %250 = vmatpush1.bf16.msra.mxu0 %v240
    %251 = vmatprep.subr.bf16.mxu0 0
    %252 = vmatpush1.bf16.msra.mxu0 %v239
    %253 = vmatprep.subr.bf16.mxu0 0
    %254 = vmatpush1.bf16.msra.mxu0 %v238
    %255 = vmatprep.subr.bf16.mxu0 0
    %256 = vmatpush1.bf16.msra.mxu0 %v237
    %257 = vmatprep.subr.bf16.mxu0 0
    %258 = vmatpush1.bf16.msra.mxu0 %v236
    %259 = vmatprep.subr.bf16.mxu0 0
    %260 = vmatpush1.bf16.msra.mxu0 %v235
    %261 = vmatprep.subr.bf16.mxu0 0
    %262 = vmatpush1.bf16.msra.mxu0 %v234
    %263 = vmatprep.subr.bf16.mxu0 0
    %264 = vmatpush1.bf16.msra.mxu0 %v233
    %265 = vmatprep.subr.bf16.mxu0 0
    %266 = vmatpush2.bf16.msra.mxu0 0
    %267 = vmatprep.subr.bf16.mxu0 0
    %268 = vmatpush2.bf16.msra.mxu0 0
    %269 = vmatprep.subr.bf16.mxu0 0
    %270 = vmatpush2.bf16.msra.mxu0 0
    %271 = vmatprep.subr.bf16.mxu0 0
    %272 = vmatpush2.bf16.msra.mxu0 0
    %273 = vmatprep.subr.bf16.mxu0 0
    %274 = vmatpush2.bf16.msra.mxu0 0
    %275 = vmatprep.subr.bf16.mxu0 0
    %276 = vmatpush2.bf16.msra.mxu0 0
    %277 = vmatprep.subr.bf16.mxu0 0
    %278 = vmatpush2.bf16.msra.mxu0 0
    %279 = vmatprep.subr.bf16.mxu0 0
    %280 = vmatpush2.bf16.msra.mxu0 0
    %281 = vmatprep.mubr.bf16.mxu0 0
    %282 = vmatmul.mubr.bf16.gmra.mxu0 %v177
    %v283 = vpop.f32.mrf.mxu0
    %v284 = vadd.f32 %v199, %v283
    %v285 = vpop.f32.mrf.mxu0
    %v286 = vpop.f32.mrf.mxu0
    %v287 = vadd.f32 %v199, %v286
    %v288 = vpop.f32.mrf.mxu0
    %289 = vdwg.mxu0
    %v290 = vmax.f32 %v284, 0.0
    %v291 = vmax.f32 %v287, 0.0
    %v292 = vld [vmem:[%s5] sm:$0x1]
    %v294 = vlaneseq
    %v295 = vshrl.u32 %v294, 7
    %v296 = vsub.s32 0, %v295
    %v297 = vrot.slane %v292, %v296
    %v299 = vmul.f32 %v290, %v297
    %v300 = vmul.f32 %v291, %v297
    %301 = vadd.xlane.f32.xlu0 %v299
    %v302 = vpop.xlane.xlu0 %301
    %303 = vadd.xlane.f32.xlu0 %v300
    %v304 = vpop.xlane.xlu0 %303
    %v305 = vld [vmem:[%s6] sm:$0x1]
    %v307 = vlaneseq
    %v308 = vshrl.u32 %v307, 7
    %v309 = vsub.s32 0, %v308
    %v310 = vrot.slane %v305, %v309
    %v312 = vadd.f32 %v302, %v310
    %v313 = vadd.f32 %v304, %v310
    %314 = vst [vmem:[%s7] sm:$0xff] %v312
    %315 = vst [vmem:[%s7 + $0x8] sm:$0xff] %v313
    // Predicated region
    $region38: #{cost_critic_forward.1} parent=1 // pred_check
      _
    $region39: #{cost_critic_forward.1} parent=1 // pred_check_branch
      %317 = sbr.rel (0) target = $region41
    $region40: #{cost_critic_forward.1} parent=1 // pred_region
      _
    $region41: #{cost_critic_forward.1} parent=1 // pred_fallthru
      _
    // Predicated region
    $region42: #{cost_critic_forward.1} parent=1 // pred_check
      _
    $region43: #{cost_critic_forward.1} parent=1 // pred_check_branch
      %319 = sbr.rel (0) target = $region45
    $region44: #{cost_critic_forward.1} parent=1 // pred_region
      _
    $region45: #{cost_critic_forward.1} parent=1 // pred_fallthru
      _
    %320 = vsyncpa [#allocation3], 1
    %321 = vsyncpa [#allocation5], 1

</llo_original>
